<compile_context>
chip_gen: v6e
topology: v6e:2x2x1
jax: 0.10.0
libtpu: 0.0.40
codegen_flags: <defaults>
</compile_context>

<pallas_src>
import jax
import jax.numpy as jnp
from jax.experimental import pallas as pl
from jax.experimental.pallas import tpu as pltpu

NUM_BOARD_VALUES = 11
STATE_DIM = 7
IN_FEATURES = STATE_DIM ** 2 * NUM_BOARD_VALUES   # 539
HIDDEN = 256
# len(bp.Policy.ACTIONS) is not available in this self-contained script; a
# typical snake policy has 3 actions ('L', 'R', 'F').
NUM_ACTIONS = 3


def _round_up(x, m):
    return (x + m - 1) // m * m


def _make_actor_kernel(num_actions):
    def actor_kernel(x_ref, w1_ref, b1_ref, w2_ref, b2_ref, o_ref):
        """One batch tile of the actor MLP: relu(x@w1+b1)@w2+b2 -> softmax."""
        # x tile arrives as f32 straight from HBM; cast to bf16 on the VPU
        # (cheap filler under the DMA bound) before feeding the MXU.
        x = x_ref[...].astype(jnp.bfloat16)                        # (TB, 539)
        # fc1 + relu (f32 accumulation, f32 bias add)
        h = jnp.dot(x, w1_ref[...], preferred_element_type=jnp.float32)
        h = jnp.maximum(h + b1_ref[...], 0.0)                      # (TB, 256)
        # fc2: bf16 operands, f32 accumulation. Padded logit lanes carry a
        # -1e30 bias so exp() of those lanes is exactly 0.
        logits = jnp.dot(h.astype(jnp.bfloat16), w2_ref[...],
                         preferred_element_type=jnp.float32)       # (TB, 128)
        logits = logits + b2_ref[...]
        # softmax over the lane-dense 128-wide tile (padded lanes exp to 0);
        # exact division so the real probabilities sum to 1 to f32 precision.
        m = jnp.max(logits, axis=-1, keepdims=True)
        e = jnp.exp(logits - m)
        denom = jnp.sum(e, axis=-1, keepdims=True)
        probs = e / denom
        # Store only the real action lanes (narrow masked store; no padded
        # writeback and no post-kernel slice pass).
        o_ref[...] = probs[:, :num_actions]
    return actor_kernel


def prepare_params(w1, b1, w2, b2):
    """One-time pad/cast of the weights (call at init, not per forward).

    w1: (IN_FEATURES, HIDDEN), b1: (HIDDEN,), w2: (HIDDEN, A), b2: (A,).
    """
    num_actions = w2.shape[1]
    n_pad = _round_up(max(num_actions, 1), 128)                    # 128
    w1_b = w1.astype(jnp.bfloat16)                                 # (539, 256)
    b1_f = b1.reshape(1, HIDDEN).astype(jnp.float32)
    w2_p = (jnp.zeros((HIDDEN, n_pad), jnp.float32)
            .at[:, :num_actions].set(w2.astype(jnp.float32))).astype(jnp.bfloat16)
    # Padded logit lanes get a huge negative bias -> exp() == 0 -> softmax over
    # the real actions is unchanged (real logits stay finite).
    b2_p = (jnp.full((1, n_pad), -1e30, jnp.float32)
            .at[0, :num_actions].set(b2.astype(jnp.float32)))
    return w1_b, b1_f, w2_p, b2_p, num_actions


def actor_forward(x, prepared):
    """x: any shape flattening (row-major) to IN_FEATURES per row.

    `prepared` comes from prepare_params(). Returns (B, num_actions) f32
    softmax probabilities.
    """
    w1_b, b1_f, w2_p, b2_p, num_actions = prepared
    n_pad = w2_p.shape[1]

    x = x.astype(jnp.float32).reshape(-1, IN_FEATURES)   # torch .view(-1, 539)
    B = x.shape[0]

    # Batch tile: full batch for tiny B (block dim == full array dim is legal),
    # otherwise a multiple of 8 chosen so the grid has >= 2 steps (keeps both
    # v7x TensorCores busy) and caps at 512 rows (DMA amortization, ~1.1 MB
    # f32 x tile double-buffered — trivial VMEM on all generations).
    if B <= 8:
        TB = B
    else:
        TB = min(512, _round_up((B + 1) // 2, 8))
    grid = (pl.cdiv(B, TB),)

    out = pl.pallas_call(
        _make_actor_kernel(num_actions),
        out_shape=jax.ShapeDtypeStruct((B, num_actions), jnp.float32),
        grid=grid,
        in_specs=[
            pl.BlockSpec((TB, IN_FEATURES), lambda i: (i, 0)),      # x tile
            pl.BlockSpec((IN_FEATURES, HIDDEN), lambda i: (0, 0)),  # w1 resident
            pl.BlockSpec((1, HIDDEN), lambda i: (0, 0)),            # b1 resident
            pl.BlockSpec((HIDDEN, n_pad), lambda i: (0, 0)),        # w2 resident
            pl.BlockSpec((1, n_pad), lambda i: (0, 0)),             # b2 resident
        ],
        out_specs=pl.BlockSpec((TB, num_actions), lambda i: (i, 0)),
        compiler_params=pltpu.CompilerParams(
            dimension_semantics=("parallel",)),
    )(x, w1_b, b1_f, w2_p, b2_p)

    return out


def init_params(key, num_actions=NUM_ACTIONS):
    """Deterministic PyTorch-style init: U(-1/sqrt(fan_in), 1/sqrt(fan_in))."""
    k1, k2, k3, k4 = jax.random.split(key, 4)
    bound1 = 1.0 / jnp.sqrt(jnp.float32(IN_FEATURES))
    bound2 = 1.0 / jnp.sqrt(jnp.float32(HIDDEN))
    # Weights stored already transposed to (in, out) for x @ W.
    w1 = jax.random.uniform(k1, (IN_FEATURES, HIDDEN), jnp.float32, -bound1, bound1)
    b1 = jax.random.uniform(k2, (HIDDEN,), jnp.float32, -bound1, bound1)
    w2 = jax.random.uniform(k3, (HIDDEN, num_actions), jnp.float32, -bound2, bound2)
    b2 = jax.random.uniform(k4, (num_actions,), jnp.float32, -bound2, bound2)
    return w1, b1, w2, b2


if __name__ == "__main__":
    key = jax.random.PRNGKey(0)
    pkey, xkey = jax.random.split(key)
    w1, b1, w2, b2 = init_params(pkey)
    prepared = prepare_params(w1, b1, w2, b2)   # one-time pad/cast

    # Small batch of board states, shape (B, 7, 7, 11).
    B = 2
    x = jax.random.uniform(xkey, (B, STATE_DIM, STATE_DIM, NUM_BOARD_VALUES),
                           jnp.float32)

    out = actor_forward(x, prepared)
    out = jax.block_until_ready(out)

    # Reference check in plain f32 JAX (kernel uses bf16 matmul operands with
    # f32 accumulation, so tolerance is loosened a bit).
    xr = x.reshape(-1, IN_FEATURES)
    ref = jax.nn.softmax(jnp.maximum(xr @ w1 + b1, 0.0) @ w2 + b2, axis=-1)
    assert out.shape == (B, NUM_ACTIONS)
    assert jnp.allclose(out, ref, atol=3e-2), "mismatch vs reference"
    assert jnp.allclose(jnp.sum(out, axis=-1), 1.0, atol=1e-3), "not normalized"

    print("KERNEL_OK")
</pallas_src>

<mosaic_0001>
module attributes {stable_mosaic.version = 11 : i64} {
  func.func @actor_kernel(%arg0: i32, %arg1: memref<2x539xf32, #tpu.memory_space<vmem>>, %arg2: memref<539x256xbf16, #tpu.memory_space<vmem>>, %arg3: memref<1x256xf32, #tpu.memory_space<vmem>>, %arg4: memref<256x128xbf16, #tpu.memory_space<vmem>>, %arg5: memref<1x128xf32, #tpu.memory_space<vmem>>, %arg6: memref<2x3xf32, #tpu.memory_space<vmem>>) attributes {dimension_semantics = [#tpu.dimension_semantics<parallel>], iteration_bounds = array<i64: 1>, scalar_prefetch = 0 : i64, scratch_operands = 0 : i64, tpu.core_type = #tpu.core_type<tc>, window_params = [{transform_indices = @transform_0, window_bounds = array<i64: 2, 539>}, {pipeline_mode = #tpu.pipeline_mode<synchronous>, transform_indices = @transform_1, window_bounds = array<i64: 539, 256>}, {pipeline_mode = #tpu.pipeline_mode<synchronous>, transform_indices = @transform_2, window_bounds = array<i64: 1, 256>}, {pipeline_mode = #tpu.pipeline_mode<synchronous>, transform_indices = @transform_3, window_bounds = array<i64: 256, 128>}, {pipeline_mode = #tpu.pipeline_mode<synchronous>, transform_indices = @transform_4, window_bounds = array<i64: 1, 128>}, {transform_indices = @transform_5, window_bounds = array<i64: 2, 3>}]} {
    %c0 = arith.constant 0 : index
    %c0_0 = arith.constant 0 : index
    %0 = vector.load %arg1[%c0, %c0_0] : memref<2x539xf32, #tpu.memory_space<vmem>>, vector<2x539xf32>
    %1 = arith.truncf %0 : vector<2x539xf32> to vector<2x539xbf16>
    %c0_1 = arith.constant 0 : index
    %c0_2 = arith.constant 0 : index
    %2 = vector.load %arg2[%c0_1, %c0_2] : memref<539x256xbf16, #tpu.memory_space<vmem>>, vector<539x256xbf16>
    %cst = arith.constant dense<0.000000e+00> : vector<2x256xf32>
    %3 = tpu.matmul %1, %2, %cst {dimension_numbers = #tpu.dot_dimension_numbers<[1], [0], [0], [1], [0, 0, 1, 1], [], []>} : vector<2x539xbf16>, vector<539x256xbf16>, vector<2x256xf32> -> vector<2x256xf32>
    %c0_3 = arith.constant 0 : index
    %c0_4 = arith.constant 0 : index
    %4 = vector.load %arg3[%c0_3, %c0_4] : memref<1x256xf32, #tpu.memory_space<vmem>>, vector<1x256xf32>
    %5 = vector.broadcast %4 : vector<1x256xf32> to vector<2x256xf32>
    %6 = arith.addf %3, %5 : vector<2x256xf32>
    %cst_5 = arith.constant 0.000000e+00 : f32
    %7 = vector.broadcast %cst_5 : f32 to vector<2x256xf32>
    %8 = arith.maximumf %6, %7 : vector<2x256xf32>
    %9 = arith.truncf %8 : vector<2x256xf32> to vector<2x256xbf16>
    %c0_6 = arith.constant 0 : index
    %c0_7 = arith.constant 0 : index
    %10 = vector.load %arg4[%c0_6, %c0_7] : memref<256x128xbf16, #tpu.memory_space<vmem>>, vector<256x128xbf16>
    %cst_8 = arith.constant dense<0.000000e+00> : vector<2x128xf32>
    %11 = tpu.matmul %9, %10, %cst_8 {dimension_numbers = #tpu.dot_dimension_numbers<[1], [0], [0], [1], [0, 0, 1, 1], [], []>} : vector<2x256xbf16>, vector<256x128xbf16>, vector<2x128xf32> -> vector<2x128xf32>
    %c0_9 = arith.constant 0 : index
    %c0_10 = arith.constant 0 : index
    %12 = vector.load %arg5[%c0_9, %c0_10] : memref<1x128xf32, #tpu.memory_space<vmem>>, vector<1x128xf32>
    %13 = vector.broadcast %12 : vector<1x128xf32> to vector<2x128xf32>
    %14 = arith.addf %11, %13 : vector<2x128xf32>
    %cst_11 = arith.constant dense<0xFF800000> : vector<2xf32>
    %15 = vector.multi_reduction <maximumf>, %14, %cst_11 [1] : vector<2x128xf32> to vector<2xf32>
    %16 = vector.shape_cast %15 : vector<2xf32> to vector<2x1xf32>
    %17 = vector.broadcast %16 : vector<2x1xf32> to vector<2x128xf32>
    %18 = arith.subf %14, %17 : vector<2x128xf32>
    %19 = math.exp %18 : vector<2x128xf32>
    %cst_12 = arith.constant dense<0.000000e+00> : vector<2xf32>
    %20 = vector.multi_reduction <add>, %19, %cst_12 [1] : vector<2x128xf32> to vector<2xf32>
    %21 = vector.shape_cast %20 : vector<2xf32> to vector<2x1xf32>
    %22 = vector.broadcast %21 : vector<2x1xf32> to vector<2x128xf32>
    %23 = arith.divf %19, %22 : vector<2x128xf32>
    %24 = vector.extract_strided_slice %23 {offsets = [0, 0], sizes = [2, 3], strides = [1, 1]} : vector<2x128xf32> to vector<2x3xf32>
    %c0_13 = arith.constant 0 : index
    %c0_14 = arith.constant 0 : index
    %25 = vector.load %arg6[%c0_13, %c0_14] : memref<2x3xf32, #tpu.memory_space<vmem>>, vector<2x3xf32>
    tpu.vector_store %arg6[%c0_13, %c0_14], %24 {strides = array<i32>} : memref<2x3xf32, #tpu.memory_space<vmem>>, vector<2x3xf32>,
    return
  }
  func.func @transform_0(%arg0: i32) -> (i32, i32) {
    %c0_i32 = arith.constant 0 : i32
    %c0_i32_0 = arith.constant 0 : i32
    return %arg0, %c0_i32 : i32, i32
  }
  func.func @transform_1(%arg0: i32) -> (i32, i32) {
    %c0_i32 = arith.constant 0 : i32
    %c0_i32_0 = arith.constant 0 : i32
    %c0_i32_1 = arith.constant 0 : i32
    return %c0_i32, %c0_i32_0 : i32, i32
  }
  func.func @transform_2(%arg0: i32) -> (i32, i32) {
    %c0_i32 = arith.constant 0 : i32
    %c0_i32_0 = arith.constant 0 : i32
    %c0_i32_1 = arith.constant 0 : i32
    return %c0_i32, %c0_i32_0 : i32, i32
  }
  func.func @transform_3(%arg0: i32) -> (i32, i32) {
    %c0_i32 = arith.constant 0 : i32
    %c0_i32_0 = arith.constant 0 : i32
    %c0_i32_1 = arith.constant 0 : i32
    return %c0_i32, %c0_i32_0 : i32, i32
  }
  func.func @transform_4(%arg0: i32) -> (i32, i32) {
    %c0_i32 = arith.constant 0 : i32
    %c0_i32_0 = arith.constant 0 : i32
    %c0_i32_1 = arith.constant 0 : i32
    return %c0_i32, %c0_i32_0 : i32, i32
  }
  func.func @transform_5(%arg0: i32) -> (i32, i32) {
    %c0_i32 = arith.constant 0 : i32
    %c0_i32_0 = arith.constant 0 : i32
    return %arg0, %c0_i32 : i32, i32
  }
}

</mosaic_0001>

<llo_original>
// kernel: tpu_custom_call.1
$region0: #{tpu_custom_call.1}
  #allocation0 [shape = 'u32[]', space=smem, size = 0x4, offset = 0x4, fixed_abs, tag = 'smem constant byte address 0x4 - core index']
  #allocation1 [shape = 'u32[144,128]{1,0:T(1,128)}', space=vmem, size = 0x12000, scoped, tag = 'internal scratch']
  %s0 = inlined_call_operand.hbm [shape: f32[2,539], index: 0, kind: input, shape index: {}]
  %s1 = inlined_call_operand.hbm [shape: bf16[539,256], index: 1, kind: input, shape index: {}]
  %s2 = inlined_call_operand.vmem [shape: f32[1,256], index: 2, kind: input, shape index: {}]
  %s3 = inlined_call_operand.hbm [shape: bf16[256,128], index: 3, kind: input, shape index: {}]
  %s4 = inlined_call_operand.vmem [shape: f32[1,128], index: 4, kind: input, shape index: {}]
  %s5 = inlined_call_operand.hbm [shape: f32[2,3], index: 5, kind: output, shape index: {}]
  %s6 = sld [smem:[#allocation0]]
  $region42: #{tpu_custom_call.1} parent=0
    _
  %s8 = ssub.s32 1, %s6
  %s9 = scalar_select 0, %s8, %s6
  $region1: #{tpu_custom_call.1} parent=0
    #allocation2 [shape = 'u8[5120]{0}', space=vmem, size = 0x1400, scoped, tag = 'input window, operand 0, single buffered']
    #allocation3 [shape = 's32[1]{0}', space=sflag, size = 0x4, scoped, tag = 'scoped memory for tpu_custom_call.1']
    #allocation4 [shape = 's32[1]{0}', space=sflag, size = 0x4, scoped, tag = 'scoped memory for tpu_custom_call.1']
    #allocation5 [shape = 'u8[278528]{0}', space=vmem, size = 0x44000, scoped, tag = 'input window, operand 1, single buffered']
    #allocation6 [shape = 's32[1]{0}', space=sflag, size = 0x4, scoped, tag = 'scoped memory for tpu_custom_call.1']
    #allocation7 [shape = 'u8[65536]{0}', space=vmem, size = 0x10000, scoped, tag = 'input window, operand 3, single buffered']
    #allocation8 [shape = 'u8[1024]{0}', space=vmem, size = 0x400, scoped, tag = 'output window, operand 0, single buffered']
    %10 = vsyncpa [#allocation3], 0
    %11 = vsyncpa [#allocation6], 0
    %12 = vsyncpa [#allocation4], 0
    // Predicated region
    $region2: #{tpu_custom_call.1} parent=1 // pred_check
      _
    $region3: #{tpu_custom_call.1} parent=1 // pred_check_branch
      %14 = sbr.rel (0) target = $region5
    $region4: #{tpu_custom_call.1} parent=1 // pred_region
      %s16 = ssub.s32 160, 160
      %17 = vsyncadd [#allocation3], %s16
      %s19 = sshll.u32 [#allocation2], 4
      %s20 = int_to_ptr.vmem [resolvable:$true] %s19
      %22 = dma.hbm_to_vmem [thread:$0]  %s0, 160, %s20, [#allocation3]
    $region5: #{tpu_custom_call.1} parent=1 // pred_fallthru
      _
    // Predicated region
    $region6: #{tpu_custom_call.1} parent=1 // pred_check
      _
    $region7: #{tpu_custom_call.1} parent=1 // pred_check_branch
      %24 = sbr.rel (0) target = $region9
    $region8: #{tpu_custom_call.1} parent=1 // pred_region
      %s26 = ssub.s32 8704, 8704
      %27 = vsyncadd [#allocation6], %s26
      %s28 = sshll.u32 [#allocation5], 4
      %s29 = int_to_ptr.vmem [resolvable:$true] %s28
      %34 = dma.hbm_to_vmem [thread:$0]  %s1, 8704, %s29, [#allocation6], 128, 128, 8
    $region9: #{tpu_custom_call.1} parent=1 // pred_fallthru
      _
    // Predicated region
    $region10: #{tpu_custom_call.1} parent=1 // pred_check
      _
    $region11: #{tpu_custom_call.1} parent=1 // pred_check_branch
      %36 = sbr.rel (0) target = $region13
    $region12: #{tpu_custom_call.1} parent=1 // pred_region
      _
    $region13: #{tpu_custom_call.1} parent=1 // pred_fallthru
      _
    // Predicated region
    $region14: #{tpu_custom_call.1} parent=1 // pred_check
      _
    $region15: #{tpu_custom_call.1} parent=1 // pred_check_branch
      %38 = sbr.rel (0) target = $region17
    $region16: #{tpu_custom_call.1} parent=1 // pred_region
      %s40 = ssub.s32 2048, 2048
      %41 = vsyncadd [#allocation6], %s40
      %s42 = sshll.u32 [#allocation7], 4
      %s43 = int_to_ptr.vmem [resolvable:$true] %s42
      %48 = dma.hbm_to_vmem [thread:$0]  %s3, 2048, %s43, [#allocation6], 64, 64, 4
    $region17: #{tpu_custom_call.1} parent=1 // pred_fallthru
      _
    // Predicated region
    $region18: #{tpu_custom_call.1} parent=1 // pred_check
      _
    $region19: #{tpu_custom_call.1} parent=1 // pred_check_branch
      %50 = sbr.rel (0) target = $region21
    $region20: #{tpu_custom_call.1} parent=1 // pred_region
      _
    $region21: #{tpu_custom_call.1} parent=1 // pred_fallthru
      _
    // Predicated region
    $region22: #{tpu_custom_call.1} parent=1 // pred_check
      _
    $region23: #{tpu_custom_call.1} parent=1 // pred_check_branch
      %52 = sbr.rel (0) target = $region25
    $region24: #{tpu_custom_call.1} parent=1 // pred_region
      %53 = dma.done [#allocation3], 160
    $region25: #{tpu_custom_call.1} parent=1 // pred_fallthru
      _
    // Predicated region
    $region26: #{tpu_custom_call.1} parent=1 // pred_check
      _
    $region27: #{tpu_custom_call.1} parent=1 // pred_check_branch
      %55 = sbr.rel (0) target = $region29
    $region28: #{tpu_custom_call.1} parent=1 // pred_region
      %56 = dma.done [#allocation6], 8704
    $region29: #{tpu_custom_call.1} parent=1 // pred_fallthru
      _
    // Predicated region
    $region30: #{tpu_custom_call.1} parent=1 // pred_check
      _
    $region31: #{tpu_custom_call.1} parent=1 // pred_check_branch
      %58 = sbr.rel (0) target = $region33
    $region32: #{tpu_custom_call.1} parent=1 // pred_region
      %59 = dma.done [#allocation6], 2048
    $region33: #{tpu_custom_call.1} parent=1 // pred_fallthru
      _
    %v61 = vld [vmem:[#allocation2] sm:$0xff]
    %v62 = vld [vmem:[#allocation2 + $0x8] sm:$0x3]
    %v65 = vcombine.high %v61, %v61
    %v67 = vunpack.c.l.s4 1983009808
    %v68 = vunpack.c.0.s8 %v67
    %v69 = vlaneseq
    %v70 = vshrl.u32 %v69, 7
    %v71 = vsub.s32 %v68, %v70
    %v72 = vrot.slane %v61, %v71
    %v74 = vunpack.c.l.s4 1983009808
    %v75 = vunpack.c.0.s8 %v74
    %v76 = vlaneseq
    %v77 = vshrl.u32 %v76, 7
    %v78 = vsub.s32 %v75, %v77
    %v79 = vrot.slane %v65, %v78
    %v80 = vcombine.high %v72, %v72
    %v81 = vcombine.high %v79, %v79
    %v83 = vunpack.c.l.s4 1983009808
    %v84 = vunpack.c.0.s8 %v83
    %v85 = vlaneseq
    %v86 = vshrl.u32 %v85, 7
    %v87 = vsub.s32 %v84, %v86
    %v88 = vrot.slane %v62, %v87
    %v94 = vpack.c.bf16 %v72, %v72
    %v95 = vpack.c.bf16 %v80, %v80
    %v96 = vpack.c.bf16 %v79, %v79
    %v97 = vpack.c.bf16 %v81, %v81
    %v98 = vpack.c.bf16 %v88, %v88
    %v99 = vld [vmem:[#allocation5] sm:$0xff]
    %v100 = vld [vmem:[#allocation5 + $0x8] sm:$0xff]
    %v101 = vld [vmem:[#allocation5 + $0x10] sm:$0xff]
    %v102 = vld [vmem:[#allocation5 + $0x18] sm:$0xff]
    %v103 = vld [vmem:[#allocation5 + $0x20] sm:$0xff]
    %v104 = vld [vmem:[#allocation5 + $0x28] sm:$0xff]
    %v105 = vld [vmem:[#allocation5 + $0x30] sm:$0xff]
    %v106 = vld [vmem:[#allocation5 + $0x38] sm:$0xff]
    %v107 = vld [vmem:[#allocation5 + $0x40] sm:$0xff]
    %v108 = vld [vmem:[#allocation5 + $0x48] sm:$0xff]
    %v109 = vld [vmem:[#allocation5 + $0x50] sm:$0xff]
    %v110 = vld [vmem:[#allocation5 + $0x58] sm:$0xff]
    %v111 = vld [vmem:[#allocation5 + $0x60] sm:$0xff]
    %v112 = vld [vmem:[#allocation5 + $0x68] sm:$0xff]
    %v113 = vld [vmem:[#allocation5 + $0x70] sm:$0xff]
    %v114 = vld [vmem:[#allocation5 + $0x78] sm:$0xff]
    %v115 = vld [vmem:[#allocation5 + $0x80] sm:$0xff]
    %v116 = vld [vmem:[#allocation5 + $0x88] sm:$0xff]
    %v117 = vld [vmem:[#allocation5 + $0x90] sm:$0xff]
    %v118 = vld [vmem:[#allocation5 + $0x98] sm:$0xff]
    %v119 = vld [vmem:[#allocation5 + $0xa0] sm:$0xff]
    %v120 = vld [vmem:[#allocation5 + $0xa8] sm:$0xff]
    %v121 = vld [vmem:[#allocation5 + $0xb0] sm:$0xff]
    %v122 = vld [vmem:[#allocation5 + $0xb8] sm:$0xff]
    %v123 = vld [vmem:[#allocation5 + $0xc0] sm:$0xff]
    %v124 = vld [vmem:[#allocation5 + $0xc8] sm:$0xff]
    %v125 = vld [vmem:[#allocation5 + $0xd0] sm:$0xff]
    %v126 = vld [vmem:[#allocation5 + $0xd8] sm:$0xff]
    %v127 = vld [vmem:[#allocation5 + $0xe0] sm:$0xff]
    %v128 = vld [vmem:[#allocation5 + $0xe8] sm:$0xff]
    %v129 = vld [vmem:[#allocation5 + $0xf0] sm:$0xff]
    %v130 = vld [vmem:[#allocation5 + $0xf8] sm:$0xff]
    %v131 = vld [vmem:[#allocation5 + $0x100] sm:$0xff]
    %v132 = vld [vmem:[#allocation5 + $0x108] sm:$0xff]
    %v133 = vld [vmem:[#allocation5 + $0x110] sm:$0xff]
    %v134 = vld [vmem:[#allocation5 + $0x118] sm:$0xff]
    %v135 = vld [vmem:[#allocation5 + $0x120] sm:$0xff]
    %v136 = vld [vmem:[#allocation5 + $0x128] sm:$0xff]
    %v137 = vld [vmem:[#allocation5 + $0x130] sm:$0xff]
    %v138 = vld [vmem:[#allocation5 + $0x138] sm:$0xff]
    %v139 = vld [vmem:[#allocation5 + $0x140] sm:$0xff]
    %v140 = vld [vmem:[#allocation5 + $0x148] sm:$0xff]
    %v141 = vld [vmem:[#allocation5 + $0x150] sm:$0xff]
    %v142 = vld [vmem:[#allocation5 + $0x158] sm:$0xff]
    %v143 = vld [vmem:[#allocation5 + $0x160] sm:$0xff]
    %v144 = vld [vmem:[#allocation5 + $0x168] sm:$0xff]
    %v145 = vld [vmem:[#allocation5 + $0x170] sm:$0xff]
    %v146 = vld [vmem:[#allocation5 + $0x178] sm:$0xff]
    %v147 = vld [vmem:[#allocation5 + $0x180] sm:$0xff]
    %v148 = vld [vmem:[#allocation5 + $0x188] sm:$0xff]
    %v149 = vld [vmem:[#allocation5 + $0x190] sm:$0xff]
    %v150 = vld [vmem:[#allocation5 + $0x198] sm:$0xff]
    %v151 = vld [vmem:[#allocation5 + $0x1a0] sm:$0xff]
    %v152 = vld [vmem:[#allocation5 + $0x1a8] sm:$0xff]
    %v153 = vld [vmem:[#allocation5 + $0x1b0] sm:$0xff]
    %v154 = vld [vmem:[#allocation5 + $0x1b8] sm:$0xff]
    %v155 = vld [vmem:[#allocation5 + $0x1c0] sm:$0xff]
    %v156 = vld [vmem:[#allocation5 + $0x1c8] sm:$0xff]
    %v157 = vld [vmem:[#allocation5 + $0x1d0] sm:$0xff]
    %v158 = vld [vmem:[#allocation5 + $0x1d8] sm:$0xff]
    %v159 = vld [vmem:[#allocation5 + $0x1e0] sm:$0xff]
    %v160 = vld [vmem:[#allocation5 + $0x1e8] sm:$0xff]
    %v161 = vld [vmem:[#allocation5 + $0x1f0] sm:$0xff]
    %v162 = vld [vmem:[#allocation5 + $0x1f8] sm:$0xff]
    %v163 = vld [vmem:[#allocation5 + $0x200] sm:$0xff]
    %v164 = vld [vmem:[#allocation5 + $0x208] sm:$0xff]
    %v165 = vld [vmem:[#allocation5 + $0x210] sm:$0xff]
    %v166 = vld [vmem:[#allocation5 + $0x218] sm:$0x33]
    %v167 = vld [vmem:[%s2] sm:$0x3]
    %v169 = vlaneseq
    %v170 = vshrl.u32 %v169, 7
    %v171 = vsub.s32 0, %v170
    %v172 = vrot.slane %v167, %v171
    %v173 = vlaneseq
    %v174 = vshrl.u32 %v173, 7
    %v175 = vsub.s32 1, %v174
    %v176 = vrot.slane %v167, %v175
    %v247 = vunpack.c.l.b16 %v99
    %v248 = vunpack.c.h.b16 %v99
    %v249 = vunpack.c.l.b16 %v100
    %v250 = vunpack.c.h.b16 %v100
    %v251 = vunpack.c.l.b16 %v101
    %v252 = vunpack.c.h.b16 %v101
    %v253 = vunpack.c.l.b16 %v102
    %v254 = vunpack.c.h.b16 %v102
    %v255 = vunpack.c.l.b16 %v103
    %v256 = vunpack.c.h.b16 %v103
    %v257 = vunpack.c.l.b16 %v104
    %v258 = vunpack.c.h.b16 %v104
    %v259 = vunpack.c.l.b16 %v105
    %v260 = vunpack.c.h.b16 %v105
    %v261 = vunpack.c.l.b16 %v106
    %v262 = vunpack.c.h.b16 %v106
    %v263 = vunpack.c.l.b16 %v107
    %v264 = vunpack.c.h.b16 %v107
    %v265 = vunpack.c.l.b16 %v108
    %v266 = vunpack.c.h.b16 %v108
    %v267 = vunpack.c.l.b16 %v109
    %v268 = vunpack.c.h.b16 %v109
    %v269 = vunpack.c.l.b16 %v110
    %v270 = vunpack.c.h.b16 %v110
    %v271 = vunpack.c.l.b16 %v111
    %v272 = vunpack.c.h.b16 %v111
    %v273 = vunpack.c.l.b16 %v112
    %v274 = vunpack.c.h.b16 %v112
    %v275 = vunpack.c.l.b16 %v113
    %v276 = vunpack.c.h.b16 %v113
    %v277 = vunpack.c.l.b16 %v114
    %v278 = vunpack.c.h.b16 %v114
    %v279 = vunpack.c.l.b16 %v115
    %v280 = vunpack.c.h.b16 %v115
    %v281 = vunpack.c.l.b16 %v116
    %v282 = vunpack.c.h.b16 %v116
    %v283 = vunpack.c.l.b16 %v117
    %v284 = vunpack.c.h.b16 %v117
    %v285 = vunpack.c.l.b16 %v118
    %v286 = vunpack.c.h.b16 %v118
    %v287 = vunpack.c.l.b16 %v119
    %v288 = vunpack.c.h.b16 %v119
    %v289 = vunpack.c.l.b16 %v120
    %v290 = vunpack.c.h.b16 %v120
    %v291 = vunpack.c.l.b16 %v121
    %v292 = vunpack.c.h.b16 %v121
    %v293 = vunpack.c.l.b16 %v122
    %v294 = vunpack.c.h.b16 %v122
    %v295 = vunpack.c.l.b16 %v123
    %v296 = vunpack.c.h.b16 %v123
    %v297 = vunpack.c.l.b16 %v124
    %v298 = vunpack.c.h.b16 %v124
    %v299 = vunpack.c.l.b16 %v125
    %v300 = vunpack.c.h.b16 %v125
    %v301 = vunpack.c.l.b16 %v126
    %v302 = vunpack.c.h.b16 %v126
    %v303 = vunpack.c.l.b16 %v127
    %v304 = vunpack.c.h.b16 %v127
    %v305 = vunpack.c.l.b16 %v128
    %v306 = vunpack.c.h.b16 %v128
    %v307 = vunpack.c.l.b16 %v129
    %v308 = vunpack.c.h.b16 %v129
    %v309 = vunpack.c.l.b16 %v130
    %v310 = vunpack.c.h.b16 %v130
    %v311 = vunpack.c.l.b16 %v131
    %v312 = vunpack.c.h.b16 %v131
    %v313 = vunpack.c.l.b16 %v132
    %v314 = vunpack.c.h.b16 %v132
    %v315 = vunpack.c.l.b16 %v133
    %v316 = vunpack.c.h.b16 %v133
    %v317 = vunpack.c.l.b16 %v134
    %v318 = vunpack.c.h.b16 %v134
    %v319 = vunpack.c.l.b16 %v135
    %v320 = vunpack.c.h.b16 %v135
    %v321 = vunpack.c.l.b16 %v136
    %v322 = vunpack.c.h.b16 %v136
    %v323 = vunpack.c.l.b16 %v137
    %v324 = vunpack.c.h.b16 %v137
    %v325 = vunpack.c.l.b16 %v138
    %v326 = vunpack.c.h.b16 %v138
    %v327 = vunpack.c.l.b16 %v139
    %v328 = vunpack.c.h.b16 %v139
    %v329 = vunpack.c.l.b16 %v140
    %v330 = vunpack.c.h.b16 %v140
    %v331 = vunpack.c.l.b16 %v141
    %v332 = vunpack.c.h.b16 %v141
    %v333 = vunpack.c.l.b16 %v142
    %v334 = vunpack.c.h.b16 %v142
    %v335 = vunpack.c.l.b16 %v143
    %v336 = vunpack.c.h.b16 %v143
    %v337 = vunpack.c.l.b16 %v144
    %v338 = vunpack.c.h.b16 %v144
    %v339 = vunpack.c.l.b16 %v145
    %v340 = vunpack.c.h.b16 %v145
    %v341 = vunpack.c.l.b16 %v146
    %v342 = vunpack.c.h.b16 %v146
    %v343 = vunpack.c.l.b16 %v147
    %v344 = vunpack.c.h.b16 %v147
    %v345 = vunpack.c.l.b16 %v148
    %v346 = vunpack.c.h.b16 %v148
    %v347 = vunpack.c.l.b16 %v149
    %v348 = vunpack.c.h.b16 %v149
    %v349 = vunpack.c.l.b16 %v150
    %v350 = vunpack.c.h.b16 %v150
    %v351 = vunpack.c.l.b16 %v151
    %v352 = vunpack.c.h.b16 %v151
    %v353 = vunpack.c.l.b16 %v152
    %v354 = vunpack.c.h.b16 %v152
    %v355 = vunpack.c.l.b16 %v153
    %v356 = vunpack.c.h.b16 %v153
    %v357 = vunpack.c.l.b16 %v154
    %v358 = vunpack.c.h.b16 %v154
    %v359 = vunpack.c.l.b16 %v155
    %v360 = vunpack.c.h.b16 %v155
    %v361 = vunpack.c.l.b16 %v156
    %v362 = vunpack.c.h.b16 %v156
    %v363 = vunpack.c.l.b16 %v157
    %v364 = vunpack.c.h.b16 %v157
    %v365 = vunpack.c.l.b16 %v158
    %v366 = vunpack.c.h.b16 %v158
    %v367 = vunpack.c.l.b16 %v159
    %v368 = vunpack.c.h.b16 %v159
    %v369 = vunpack.c.l.b16 %v160
    %v370 = vunpack.c.h.b16 %v160
    %v371 = vunpack.c.l.b16 %v161
    %v372 = vunpack.c.h.b16 %v161
    %v373 = vunpack.c.l.b16 %v162
    %v374 = vunpack.c.h.b16 %v162
    %v375 = vunpack.c.l.b16 %v163
    %v376 = vunpack.c.h.b16 %v163
    %v377 = vunpack.c.l.b16 %v164
    %v378 = vunpack.c.h.b16 %v164
    %v379 = vunpack.c.l.b16 %v165
    %v380 = vunpack.c.h.b16 %v165
    %v381 = vunpack.c.l.b16 %v166
    %v382 = vunpack.c.h.b16 %v166
    %v383 = vpack.c.b16 %v249, %v247
    %v384 = vpack.c.b16 %v250, %v248
    %v385 = vpack.c.b16 %v253, %v251
    %v386 = vpack.c.b16 %v254, %v252
    %v387 = vpack.c.b16 %v257, %v255
    %v388 = vpack.c.b16 %v258, %v256
    %v389 = vpack.c.b16 %v261, %v259
    %v390 = vpack.c.b16 %v262, %v260
    %v391 = vpack.c.b16 %v265, %v263
    %v392 = vpack.c.b16 %v266, %v264
    %v393 = vpack.c.b16 %v269, %v267
    %v394 = vpack.c.b16 %v270, %v268
    %v395 = vpack.c.b16 %v273, %v271
    %v396 = vpack.c.b16 %v274, %v272
    %v397 = vpack.c.b16 %v277, %v275
    %v398 = vpack.c.b16 %v278, %v276
    %v399 = vpack.c.b16 %v281, %v279
    %v400 = vpack.c.b16 %v282, %v280
    %v401 = vpack.c.b16 %v285, %v283
    %v402 = vpack.c.b16 %v286, %v284
    %v403 = vpack.c.b16 %v289, %v287
    %v404 = vpack.c.b16 %v290, %v288
    %v405 = vpack.c.b16 %v293, %v291
    %v406 = vpack.c.b16 %v294, %v292
    %v407 = vpack.c.b16 %v297, %v295
    %v408 = vpack.c.b16 %v298, %v296
    %v409 = vpack.c.b16 %v301, %v299
    %v410 = vpack.c.b16 %v302, %v300
    %v411 = vpack.c.b16 %v305, %v303
    %v412 = vpack.c.b16 %v306, %v304
    %v413 = vpack.c.b16 %v309, %v307
    %v414 = vpack.c.b16 %v310, %v308
    %v415 = vpack.c.b16 %v313, %v311
    %v416 = vpack.c.b16 %v314, %v312
    %v417 = vpack.c.b16 %v317, %v315
    %v418 = vpack.c.b16 %v318, %v316
    %v419 = vpack.c.b16 %v321, %v319
    %v420 = vpack.c.b16 %v322, %v320
    %v421 = vpack.c.b16 %v325, %v323
    %v422 = vpack.c.b16 %v326, %v324
    %v423 = vpack.c.b16 %v329, %v327
    %v424 = vpack.c.b16 %v330, %v328
    %v425 = vpack.c.b16 %v333, %v331
    %v426 = vpack.c.b16 %v334, %v332
    %v427 = vpack.c.b16 %v337, %v335
    %v428 = vpack.c.b16 %v338, %v336
    %v429 = vpack.c.b16 %v341, %v339
    %v430 = vpack.c.b16 %v342, %v340
    %v431 = vpack.c.b16 %v345, %v343
    %v432 = vpack.c.b16 %v346, %v344
    %v433 = vpack.c.b16 %v349, %v347
    %v434 = vpack.c.b16 %v350, %v348
    %v435 = vpack.c.b16 %v353, %v351
    %v436 = vpack.c.b16 %v354, %v352
    %v437 = vpack.c.b16 %v357, %v355
    %v438 = vpack.c.b16 %v358, %v356
    %v439 = vpack.c.b16 %v361, %v359
    %v440 = vpack.c.b16 %v362, %v360
    %v441 = vpack.c.b16 %v365, %v363
    %v442 = vpack.c.b16 %v366, %v364
    %v443 = vpack.c.b16 %v369, %v367
    %v444 = vpack.c.b16 %v370, %v368
    %v445 = vpack.c.b16 %v373, %v371
    %v446 = vpack.c.b16 %v374, %v372
    %v447 = vpack.c.b16 %v377, %v375
    %v448 = vpack.c.b16 %v378, %v376
    %v449 = vpack.c.b16 %v381, %v379
    %v450 = vpack.c.b16 %v382, %v380
    %vm517 = vcmask 220160
    %v519 = vsel %vm517, %v98, 0
    %vm521 = vcmask 1044480
    %vm522 = vcmask 1045504
    %v523 = vsel %vm521, 4294967295, 65535
    %v524 = vsel %vm522, %v523, 0
    %v526 = vand.u32 %v449, %v524
    %v529 = vand.u32 %v450, %v524
    %531 = vmatprep.subr.bf16.mxu0 %v398
    %532 = vmatpush1.bf16.msra.mxu0 %v397
    %533 = vmatprep.subr.bf16.mxu0 %v396
    %534 = vmatpush1.bf16.msra.mxu0 %v395
    %535 = vmatprep.subr.bf16.mxu0 %v394
    %536 = vmatpush1.bf16.msra.mxu0 %v393
    %537 = vmatprep.subr.bf16.mxu0 %v392
    %538 = vmatpush1.bf16.msra.mxu0 %v391
    %539 = vmatprep.subr.bf16.mxu0 %v390
    %540 = vmatpush1.bf16.msra.mxu0 %v389
    %541 = vmatprep.subr.bf16.mxu0 %v388
    %542 = vmatpush1.bf16.msra.mxu0 %v387
    %543 = vmatprep.subr.bf16.mxu0 %v386
    %544 = vmatpush1.bf16.msra.mxu0 %v385
    %545 = vmatprep.subr.bf16.mxu0 %v384
    %546 = vmatpush1.bf16.msra.mxu0 %v383
    %547 = vmatprep.subr.bf16.mxu0 %v414
    %548 = vmatpush2.bf16.msra.mxu0 %v413
    %549 = vmatprep.subr.bf16.mxu0 %v412
    %550 = vmatpush2.bf16.msra.mxu0 %v411
    %551 = vmatprep.subr.bf16.mxu0 %v410
    %552 = vmatpush2.bf16.msra.mxu0 %v409
    %553 = vmatprep.subr.bf16.mxu0 %v408
    %554 = vmatpush2.bf16.msra.mxu0 %v407
    %555 = vmatprep.subr.bf16.mxu0 %v406
    %556 = vmatpush2.bf16.msra.mxu0 %v405
    %557 = vmatprep.subr.bf16.mxu0 %v404
    %558 = vmatpush2.bf16.msra.mxu0 %v403
    %559 = vmatprep.subr.bf16.mxu0 %v402
    %560 = vmatpush2.bf16.msra.mxu0 %v401
    %561 = vmatprep.subr.bf16.mxu0 %v400
    %562 = vmatpush2.bf16.msra.mxu0 %v399
    %563 = vmatprep.mubr.bf16.mxu0 %v95
    %564 = vmatmul.mubr.bf16.gmra.mxu0 %v94
    %v565 = vpop.f32.mrf.mxu0
    %v566 = vadd.f32 %v172, %v565
    %v567 = vpop.f32.mrf.mxu0
    %v568 = vadd.f32 %v176, %v567
    %v569 = vpop.f32.mrf.mxu0
    %v570 = vpop.f32.mrf.mxu0
    %571 = vdwg.mxu0
    %572 = vmatprep.subr.bf16.mxu0 %v430
    %573 = vmatpush1.bf16.msra.mxu0 %v429
    %574 = vmatprep.subr.bf16.mxu0 %v428
    %575 = vmatpush1.bf16.msra.mxu0 %v427
    %576 = vmatprep.subr.bf16.mxu0 %v426
    %577 = vmatpush1.bf16.msra.mxu0 %v425
    %578 = vmatprep.subr.bf16.mxu0 %v424
    %579 = vmatpush1.bf16.msra.mxu0 %v423
    %580 = vmatprep.subr.bf16.mxu0 %v422
    %581 = vmatpush1.bf16.msra.mxu0 %v421
    %582 = vmatprep.subr.bf16.mxu0 %v420
    %583 = vmatpush1.bf16.msra.mxu0 %v419
    %584 = vmatprep.subr.bf16.mxu0 %v418
    %585 = vmatpush1.bf16.msra.mxu0 %v417
    %586 = vmatprep.subr.bf16.mxu0 %v416
    %587 = vmatpush1.bf16.msra.mxu0 %v415
    %588 = vmatprep.subr.bf16.mxu0 %v446
    %589 = vmatpush2.bf16.msra.mxu0 %v445
    %590 = vmatprep.subr.bf16.mxu0 %v444
    %591 = vmatpush2.bf16.msra.mxu0 %v443
    %592 = vmatprep.subr.bf16.mxu0 %v442
    %593 = vmatpush2.bf16.msra.mxu0 %v441
    %594 = vmatprep.subr.bf16.mxu0 %v440
    %595 = vmatpush2.bf16.msra.mxu0 %v439
    %596 = vmatprep.subr.bf16.mxu0 %v438
    %597 = vmatpush2.bf16.msra.mxu0 %v437
    %598 = vmatprep.subr.bf16.mxu0 %v436
    %599 = vmatpush2.bf16.msra.mxu0 %v435
    %600 = vmatprep.subr.bf16.mxu0 %v434
    %601 = vmatpush2.bf16.msra.mxu0 %v433
    %602 = vmatprep.subr.bf16.mxu0 %v432
    %603 = vmatpush2.bf16.msra.mxu0 %v431
    %604 = vmatprep.mubr.bf16.mxu0 %v97
    %605 = vmatmul.mubr.bf16.gmra.mxu0 %v96
    %v606 = vpop.f32.mrf.mxu0
    %v607 = vadd.f32 %v566, %v606
    %v608 = vpop.f32.mrf.mxu0
    %v609 = vadd.f32 %v568, %v608
    %v610 = vpop.f32.mrf.mxu0
    %v611 = vpop.f32.mrf.mxu0
    %612 = vdwg.mxu0
    %613 = vmatprep.subr.bf16.mxu0 0
    %614 = vmatpush1.bf16.msra.mxu0 0
    %615 = vmatprep.subr.bf16.mxu0 0
    %616 = vmatpush1.bf16.msra.mxu0 0
    %617 = vmatprep.subr.bf16.mxu0 0
    %618 = vmatpush1.bf16.msra.mxu0 0
    %619 = vmatprep.subr.bf16.mxu0 0
    %620 = vmatpush1.bf16.msra.mxu0 0
    %621 = vmatprep.subr.bf16.mxu0 0
    %622 = vmatpush1.bf16.msra.mxu0 0
    %623 = vmatprep.subr.bf16.mxu0 0
    %624 = vmatpush1.bf16.msra.mxu0 0
    %625 = vmatprep.subr.bf16.mxu0 %v529
    %626 = vmatpush1.bf16.msra.mxu0 %v526
    %627 = vmatprep.subr.bf16.mxu0 %v448
    %628 = vmatpush1.bf16.msra.mxu0 %v447
    %629 = vmatprep.subr.bf16.mxu0 0
    %630 = vmatpush2.bf16.msra.mxu0 0
    %631 = vmatprep.subr.bf16.mxu0 0
    %632 = vmatpush2.bf16.msra.mxu0 0
    %633 = vmatprep.subr.bf16.mxu0 0
    %634 = vmatpush2.bf16.msra.mxu0 0
    %635 = vmatprep.subr.bf16.mxu0 0
    %636 = vmatpush2.bf16.msra.mxu0 0
    %637 = vmatprep.subr.bf16.mxu0 0
    %638 = vmatpush2.bf16.msra.mxu0 0
    %639 = vmatprep.subr.bf16.mxu0 0
    %640 = vmatpush2.bf16.msra.mxu0 0
    %641 = vmatprep.subr.bf16.mxu0 0
    %642 = vmatpush2.bf16.msra.mxu0 0
    %643 = vmatprep.subr.bf16.mxu0 0
    %644 = vmatpush2.bf16.msra.mxu0 0
    %645 = vmatprep.mubr.bf16.mxu0 0
    %646 = vmatmul.mubr.bf16.gmra.mxu0 %v519
    %v647 = vpop.f32.mrf.mxu0
    %v648 = vadd.f32 %v607, %v647
    %v649 = vpop.f32.mrf.mxu0
    %v650 = vadd.f32 %v609, %v649
    %v651 = vpop.f32.mrf.mxu0
    %v652 = vpop.f32.mrf.mxu0
    %653 = vdwg.mxu0
    %v654 = vmax.f32 %v648, 0.0
    %v655 = vmax.f32 %v650, 0.0
    %v656 = vpack.c.bf16 %v654, %v654
    %v657 = vpack.c.bf16 %v655, %v655
    %v658 = vld [vmem:[#allocation7] sm:$0xf]
    %v659 = vld [vmem:[#allocation7 + $0x4] sm:$0xf]
    %v660 = vld [vmem:[#allocation7 + $0x8] sm:$0xf]
    %v661 = vld [vmem:[#allocation7 + $0xc] sm:$0xf]
    %v662 = vld [vmem:[#allocation7 + $0x10] sm:$0xf]
    %v663 = vld [vmem:[#allocation7 + $0x14] sm:$0xf]
    %v664 = vld [vmem:[#allocation7 + $0x18] sm:$0xf]
    %v665 = vld [vmem:[#allocation7 + $0x1c] sm:$0xf]
    %v666 = vld [vmem:[#allocation7 + $0x20] sm:$0xf]
    %v667 = vld [vmem:[#allocation7 + $0x24] sm:$0xf]
    %v668 = vld [vmem:[#allocation7 + $0x28] sm:$0xf]
    %v669 = vld [vmem:[#allocation7 + $0x2c] sm:$0xf]
    %v670 = vld [vmem:[#allocation7 + $0x30] sm:$0xf]
    %v671 = vld [vmem:[#allocation7 + $0x34] sm:$0xf]
    %v672 = vld [vmem:[#allocation7 + $0x38] sm:$0xf]
    %v673 = vld [vmem:[#allocation7 + $0x3c] sm:$0xf]
    %v674 = vld [vmem:[#allocation7 + $0x40] sm:$0xf]
    %v675 = vld [vmem:[#allocation7 + $0x44] sm:$0xf]
    %v676 = vld [vmem:[#allocation7 + $0x48] sm:$0xf]
    %v677 = vld [vmem:[#allocation7 + $0x4c] sm:$0xf]
    %v678 = vld [vmem:[#allocation7 + $0x50] sm:$0xf]
    %v679 = vld [vmem:[#allocation7 + $0x54] sm:$0xf]
    %v680 = vld [vmem:[#allocation7 + $0x58] sm:$0xf]
    %v681 = vld [vmem:[#allocation7 + $0x5c] sm:$0xf]
    %v682 = vld [vmem:[#allocation7 + $0x60] sm:$0xf]
    %v683 = vld [vmem:[#allocation7 + $0x64] sm:$0xf]
    %v684 = vld [vmem:[#allocation7 + $0x68] sm:$0xf]
    %v685 = vld [vmem:[#allocation7 + $0x6c] sm:$0xf]
    %v686 = vld [vmem:[#allocation7 + $0x70] sm:$0xf]
    %v687 = vld [vmem:[#allocation7 + $0x74] sm:$0xf]
    %v688 = vld [vmem:[#allocation7 + $0x78] sm:$0xf]
    %v689 = vld [vmem:[#allocation7 + $0x7c] sm:$0xf]
    %v690 = vld [vmem:[%s4] sm:$0x1]
    %v692 = vlaneseq
    %v693 = vshrl.u32 %v692, 7
    %v694 = vsub.s32 0, %v693
    %v695 = vrot.slane %v690, %v694
    %v729 = vunpack.c.l.b16 %v658
    %v730 = vunpack.c.l.b16 %v659
    %v731 = vunpack.c.l.b16 %v660
    %v732 = vunpack.c.l.b16 %v661
    %v733 = vunpack.c.l.b16 %v662
    %v734 = vunpack.c.l.b16 %v663
    %v735 = vunpack.c.l.b16 %v664
    %v736 = vunpack.c.l.b16 %v665
    %v737 = vunpack.c.l.b16 %v666
    %v738 = vunpack.c.l.b16 %v667
    %v739 = vunpack.c.l.b16 %v668
    %v740 = vunpack.c.l.b16 %v669
    %v741 = vunpack.c.l.b16 %v670
    %v742 = vunpack.c.l.b16 %v671
    %v743 = vunpack.c.l.b16 %v672
    %v744 = vunpack.c.l.b16 %v673
    %v745 = vunpack.c.l.b16 %v674
    %v746 = vunpack.c.l.b16 %v675
    %v747 = vunpack.c.l.b16 %v676
    %v748 = vunpack.c.l.b16 %v677
    %v749 = vunpack.c.l.b16 %v678
    %v750 = vunpack.c.l.b16 %v679
    %v751 = vunpack.c.l.b16 %v680
    %v752 = vunpack.c.l.b16 %v681
    %v753 = vunpack.c.l.b16 %v682
    %v754 = vunpack.c.l.b16 %v683
    %v755 = vunpack.c.l.b16 %v684
    %v756 = vunpack.c.l.b16 %v685
    %v757 = vunpack.c.l.b16 %v686
    %v758 = vunpack.c.l.b16 %v687
    %v759 = vunpack.c.l.b16 %v688
    %v760 = vunpack.c.l.b16 %v689
    %v761 = vpack.c.b16 %v730, %v729
    %v762 = vpack.c.b16 %v732, %v731
    %v763 = vpack.c.b16 %v734, %v733
    %v764 = vpack.c.b16 %v736, %v735
    %v765 = vpack.c.b16 %v738, %v737
    %v766 = vpack.c.b16 %v740, %v739
    %v767 = vpack.c.b16 %v742, %v741
    %v768 = vpack.c.b16 %v744, %v743
    %v769 = vpack.c.b16 %v746, %v745
    %v770 = vpack.c.b16 %v748, %v747
    %v771 = vpack.c.b16 %v750, %v749
    %v772 = vpack.c.b16 %v752, %v751
    %v773 = vpack.c.b16 %v754, %v753
    %v774 = vpack.c.b16 %v756, %v755
    %v775 = vpack.c.b16 %v758, %v757
    %v776 = vpack.c.b16 %v760, %v759
    %793 = vmatprep.subr.bf16.mxu0 0
    %794 = vmatpush1.bf16.msra.mxu0 %v768
    %795 = vmatprep.subr.bf16.mxu0 0
    %796 = vmatpush1.bf16.msra.mxu0 %v767
    %797 = vmatprep.subr.bf16.mxu0 0
    %798 = vmatpush1.bf16.msra.mxu0 %v766
    %799 = vmatprep.subr.bf16.mxu0 0
    %800 = vmatpush1.bf16.msra.mxu0 %v765
    %801 = vmatprep.subr.bf16.mxu0 0
    %802 = vmatpush1.bf16.msra.mxu0 %v764
    %803 = vmatprep.subr.bf16.mxu0 0
    %804 = vmatpush1.bf16.msra.mxu0 %v763
    %805 = vmatprep.subr.bf16.mxu0 0
    %806 = vmatpush1.bf16.msra.mxu0 %v762
    %807 = vmatprep.subr.bf16.mxu0 0
    %808 = vmatpush1.bf16.msra.mxu0 %v761
    %809 = vmatprep.subr.bf16.mxu0 0
    %810 = vmatpush2.bf16.msra.mxu0 %v776
    %811 = vmatprep.subr.bf16.mxu0 0
    %812 = vmatpush2.bf16.msra.mxu0 %v775
    %813 = vmatprep.subr.bf16.mxu0 0
    %814 = vmatpush2.bf16.msra.mxu0 %v774
    %815 = vmatprep.subr.bf16.mxu0 0
    %816 = vmatpush2.bf16.msra.mxu0 %v773
    %817 = vmatprep.subr.bf16.mxu0 0
    %818 = vmatpush2.bf16.msra.mxu0 %v772
    %819 = vmatprep.subr.bf16.mxu0 0
    %820 = vmatpush2.bf16.msra.mxu0 %v771
    %821 = vmatprep.subr.bf16.mxu0 0
    %822 = vmatpush2.bf16.msra.mxu0 %v770
    %823 = vmatprep.subr.bf16.mxu0 0
    %824 = vmatpush2.bf16.msra.mxu0 %v769
    %825 = vmatprep.mubr.bf16.mxu0 %v657
    %826 = vmatmul.mubr.bf16.gmra.mxu0 %v656
    %v827 = vpop.f32.mrf.mxu0
    %v828 = vadd.f32 %v695, %v827
    %v829 = vpop.f32.mrf.mxu0
    %v830 = vpop.f32.mrf.mxu0
    %v831 = vpop.f32.mrf.mxu0
    %832 = vdwg.mxu0
    %vm833 = vcmask 1041408
    %v834 = vsel %vm833, %v828, -inf
    %835 = vmax.xlane.f32.xlu0 %v834
    %v836 = vpop.xlane.xlu0 %835
    %v837 = vsub.f32 %v828, %v836
    %v838 = vmul.f32 %v837, 1.442695
    %v839 = vpow.pop %v838
    %v840 = vsel %vm833, %v839, 0.0
    %841 = vadd.xlane.f32.xlu0 %v840
    %v842 = vpop.xlane.xlu0 %841
    %v843 = vrcp.pop %v842
    %v844 = vmul.f32 %v839, %v843
    %vm845 = vcmask 17408
    %846 = vst.msk [vmem:[#allocation8] sm:$0x3] %vm845, %v844
    // Predicated region
    $region34: #{tpu_custom_call.1} parent=1 // pred_check
      _
    $region35: #{tpu_custom_call.1} parent=1 // pred_check_branch
      %848 = sbr.rel (0) target = $region37
    $region36: #{tpu_custom_call.1} parent=1 // pred_region
      %s850 = ssub.s32 32, 32
      %851 = vsyncadd [#allocation4], %s850
      %s853 = sshll.u32 [#allocation8], 4
      %s854 = int_to_ptr.vmem [resolvable:$true] %s853
      %856 = dma.vmem_to_hbm [thread:$0]  %s854, 32, %s5, [#allocation4]
    $region37: #{tpu_custom_call.1} parent=1 // pred_fallthru
      _
    // Predicated region
    $region38: #{tpu_custom_call.1} parent=1 // pred_check
      _
    $region39: #{tpu_custom_call.1} parent=1 // pred_check_branch
      %858 = sbr.rel (0) target = $region41
    $region40: #{tpu_custom_call.1} parent=1 // pred_region
      %859 = dma.done [#allocation4], 32
    $region41: #{tpu_custom_call.1} parent=1 // pred_fallthru
      _
    %860 = vsyncpa [#allocation3], 1
    %861 = vsyncpa [#allocation6], 1
    %862 = vsyncpa [#allocation4], 1

</llo_original>
